<compile_context>
chip_gen: v6e
topology: v6e:2x2x1
jax: 0.10.0
libtpu: 0.0.40
codegen_flags: <defaults>
</compile_context>

<pallas_src>
import functools

import jax
import jax.numpy as jnp
from jax.experimental import pallas as pl
from jax.experimental.pallas import tpu as pltpu

_LN_EPS = 1e-5  # torch.layer_norm default


def _loss_kernel(x_ref, t_ref, acc_ref, ysum_ref, *,
                 beta, n_rows, row_tile, inner, inv_k):
    """Grid = (parallel split p, row tile i within split, teacher layer j).

    Each step loads one (row_tile, H) slab of a single teacher layer, layer-norms it and
    accumulates into ysum_ref.  On the last layer step the averaged target gets its final
    LN, the Huber loss against the student slab is computed, and lane-dense partial sums
    are added to the resident (8, H) output block of this parallel split.
    """
    p = pl.program_id(0)
    i = pl.program_id(1)
    j = pl.program_id(2)
    k_steps = pl.num_programs(2)

    @pl.when(jnp.logical_and(i == 0, j == 0))
    def _():
        acc_ref[...] = jnp.zeros_like(acc_ref)

    # ---- per-layer layer norm, streamed over the K grid axis -------------------------
    t = t_ref[...].astype(jnp.float32)                       # [row_tile, H]
    mu = jnp.mean(t, axis=-1, keepdims=True)
    var = jnp.maximum(jnp.mean(t * t, axis=-1, keepdims=True) - mu * mu, 0.0)
    t_ln = (t - mu) * jax.lax.rsqrt(var + _LN_EPS)

    @pl.when(j == 0)
    def _():
        ysum_ref[...] = t_ln

    @pl.when(j > 0)
    def _():
        ysum_ref[...] += t_ln

    # ---- finalize this row tile on the last teacher layer ----------------------------
    @pl.when(j == k_steps - 1)
    def _():
        y = ysum_ref[...] * inv_k                            # mean over K layers
        mu2 = jnp.mean(y, axis=-1, keepdims=True)
        var2 = jnp.maximum(jnp.mean(y * y, axis=-1, keepdims=True) - mu2 * mu2, 0.0)
        y = (y - mu2) * jax.lax.rsqrt(var2 + _LN_EPS)

        x = x_ref[...].astype(jnp.float32)                   # [row_tile, H]
        d = x - y
        ad = jnp.abs(d)
        loss = jnp.where(ad < beta, (0.5 / beta) * d * d, ad - 0.5 * beta)

        h = loss.shape[-1]
        tile_idx = p * inner + i
        # Full tile: every row is a real row (also excludes clamped duplicate tiles).
        is_full = (tile_idx + 1) * row_tile <= n_rows

        @pl.when(is_full)
        def _():
            acc_ref[...] += jnp.sum(loss.reshape(row_tile // 8, 8, h), axis=0)

        @pl.when(jnp.logical_not(is_full))
        def _():
            row_ids = tile_idx * row_tile + jax.lax.broadcasted_iota(
                jnp.int32, (row_tile, 1), 0)
            masked = jnp.where(row_ids < n_rows, loss, 0.0)   # select: NaN-safe vs padding
            acc_ref[...] += jnp.sum(masked.reshape(row_tile // 8, 8, h), axis=0)


def _vmem_policy():
    """Per-generation sizing. v7x-like (<=64 MiB VMEM/TC, 2 TCs) stays conservative and
    targets 2 parallel splits; v5e/v6e (128 MiB, 1 TC) get larger tiles and 1 split."""
    cap_bytes = None
    try:
        info = pltpu.get_tpu_info()
        cap_bytes = getattr(info, "vmem_capacity_bytes", None)
    except Exception:
        cap_bytes = None
    if cap_bytes is None:
        cap_bytes = 64 * 1024 * 1024      # unknown hardware -> conservative (v7x-safe)
    if cap_bytes <= 64 * 1024 * 1024:
        return dict(tile_budget=20 << 20, vmem_limit=48 << 20, cap=1024, want_splits=2)
    return dict(tile_budget=56 << 20, vmem_limit=100 << 20, cap=2048, want_splits=1)


def _pick_row_tile(n_rows, h, itemsize, sublane, vmem_budget_bytes, cap):
    """Largest sublane-aligned row tile whose double-buffered student+teacher slabs plus
    the f32 LN scratch / temporaries fit the per-generation VMEM budget.  Working set is
    independent of K because teacher layers are streamed."""
    per_row = h * (4 * itemsize + 24)     # 2x2 buffered inputs + f32 scratch/temps
    tile = (vmem_budget_bytes // max(per_row, 1)) // sublane * sublane
    tile = max(sublane, min(cap, tile))
    padded_rows = ((n_rows + sublane - 1) // sublane) * sublane
    tile = min(tile, padded_rows)         # never exceed (padded) row count
    return max(sublane, tile)


def latent_prediction_loss(hidden_states_student,
                           hidden_states_teacher,
                           num_hidden_layers_to_predict: int,
                           beta: float = 1.0,
                           row_tile=None,
                           parallel_splits=None):
    """hidden_states_*: [L, B, S, H] stacks of per-layer hidden states (f32 or bf16).
    The full stacks are handed to the kernel; the last student layer and last K teacher
    layers are selected by the BlockSpec index_maps (no HBM slice copy)."""
    k = int(num_hidden_layers_to_predict)
    Ls, B, S, H = hidden_states_student.shape
    Lt = hidden_states_teacher.shape[0]
    assert hidden_states_teacher.shape[1:] == (B, S, H)
    assert 1 <= k <= Lt
    N = B * S

    # Contiguous reshapes -> free bitcasts, no HBM copy.
    xs = hidden_states_student.reshape(Ls, N, H)
    ts = hidden_states_teacher.reshape(Lt, N, H)

    policy = _vmem_policy()
    itemsize = max(jnp.dtype(xs.dtype).itemsize, jnp.dtype(ts.dtype).itemsize)
    sublane = 16 if itemsize < 4 else 8    # dtype-native sublane tile (bf16 -> 16)

    if row_tile is None:
        row_tile = _pick_row_tile(N, H, itemsize, sublane,
                                  policy["tile_budget"], policy["cap"])
    assert row_tile > 0 and row_tile % sublane == 0 and row_tile % 8 == 0

    num_tiles = pl.cdiv(N, row_tile)
    if parallel_splits is None:
        parallel_splits = policy["want_splits"]
    p_splits = max(1, min(int(parallel_splits), num_tiles))
    inner = pl.cdiv(num_tiles, p_splits)   # cdiv split; ragged/extra steps masked in-kernel

    s_layer = Ls - 1
    t_layer0 = Lt - k
    last_tile = num_tiles - 1

    def x_map(p, i, j):
        return (s_layer, jnp.minimum(p * inner + i, last_tile), 0)

    def t_map(p, i, j):
        return (t_layer0 + j, jnp.minimum(p * inner + i, last_tile), 0)

    kernel = functools.partial(
        _loss_kernel, beta=float(beta), n_rows=N, row_tile=row_tile,
        inner=inner, inv_k=1.0 / k)

    partials = pl.pallas_call(
        kernel,
        out_shape=jax.ShapeDtypeStruct((p_splits, 8, H), jnp.float32),
        grid_spec=pltpu.PrefetchScalarGridSpec(
            num_scalar_prefetch=0,
            grid=(p_splits, inner, k),
            in_specs=[
                pl.BlockSpec((None, row_tile, H), x_map),   # student: layer Ls-1 only
                pl.BlockSpec((None, row_tile, H), t_map),   # teacher: layer Lt-k+j, streamed
            ],
            out_specs=pl.BlockSpec((None, 8, H), lambda p, i, j: (p, 0, 0)),
            scratch_shapes=[pltpu.VMEM((row_tile, H), jnp.float32)],
        ),
        compiler_params=pltpu.CompilerParams(
            dimension_semantics=("parallel", "arbitrary", "arbitrary"),
            vmem_limit_bytes=policy["vmem_limit"],
        ),
    )(xs, ts)

    # Tiny cross-lane reduce + 'mean' normalization in plain JAX.
    return jnp.sum(partials) / jnp.float32(N * H)


def _reference_loss(student, teacher, k, beta=1.0):
    """Pure-JAX reference mirroring the PyTorch forward."""
    def ln(a):
        m = jnp.mean(a, axis=-1, keepdims=True)
        v = jnp.mean((a - m) ** 2, axis=-1, keepdims=True)
        return (a - m) * jax.lax.rsqrt(v + _LN_EPS)

    x = student[-1].astype(jnp.float32)
    y = jnp.mean(ln(teacher[-k:].astype(jnp.float32)), axis=0)
    y = ln(y)
    d = x - y
    ad = jnp.abs(d)
    loss = jnp.where(ad < beta, 0.5 * d * d / beta, ad - 0.5 * beta)
    return jnp.mean(loss)


if __name__ == "__main__":
    key = jax.random.PRNGKey(0)

    # (L, B, S, H, K, dtype, row_tile_override, parallel_splits_override)
    cases = [
        (4, 2, 8, 128, 3, jnp.float32, None, None),   # N=16, auto policy, single tile
        (3, 2, 13, 256, 2, jnp.bfloat16, 16, 2),      # N=26: bf16, ragged tail tile, 2 splits
        (4, 2, 20, 128, 3, jnp.float32, 16, 2),       # N=40: 3 tiles, cdiv split -> clamped step
    ]

    for idx, (L, B, S, H, K, dtype, rt, ps) in enumerate(cases):
        ks, kt = jax.random.split(jax.random.fold_in(key, idx))
        hidden_student = jax.random.normal(ks, (L, B, S, H), dtype=jnp.float32).astype(dtype)
        hidden_teacher = jax.random.normal(kt, (L, B, S, H), dtype=jnp.float32).astype(dtype)

        loss = latent_prediction_loss(hidden_student, hidden_teacher, K,
                                      row_tile=rt, parallel_splits=ps)
        loss = jax.block_until_ready(loss)

        ref = _reference_loss(hidden_student, hidden_teacher, K)
        assert jnp.allclose(loss, ref, rtol=2e-4, atol=1e-5), (idx, float(loss), float(ref))

    print("KERNEL_OK")
</pallas_src>

<mosaic_0001>
module attributes {stable_mosaic.version = 11 : i64} {
  func.func @_loss_kernel(%arg0: i32, %arg1: i32, %arg2: i32, %arg3: memref<1x16x128xf32, #tpu.memory_space<vmem>>, %arg4: memref<1x16x128xf32, #tpu.memory_space<vmem>>, %arg5: memref<1x8x128xf32, #tpu.memory_space<vmem>>, %arg6: memref<16x128xf32, #tpu.memory_space<vmem>>) attributes {dimension_semantics = [#tpu.dimension_semantics<parallel>, #tpu.dimension_semantics<arbitrary>, #tpu.dimension_semantics<arbitrary>], iteration_bounds = array<i64: 1, 1, 3>, scalar_prefetch = 0 : i64, scratch_operands = 1 : i64, tpu.core_type = #tpu.core_type<tc>, window_params = [{transform_indices = @transform_0, window_bounds = array<i64: 1, 16, 128>}, {transform_indices = @transform_1, window_bounds = array<i64: 1, 16, 128>}, {transform_indices = @transform_2, window_bounds = array<i64: 1, 8, 128>}]} {
    %c0_i32 = arith.constant 0 : i32
    %0 = arith.cmpi eq, %arg1, %c0_i32 : i32
    %c0_i32_0 = arith.constant 0 : i32
    %1 = arith.cmpi eq, %arg2, %c0_i32_0 : i32
    %2 = arith.andi %0, %1 : i1
    %3 = arith.extui %2 : i1 to i32
    %c0_i32_1 = arith.constant 0 : i32
    %4 = arith.cmpi ne, %3, %c0_i32_1 : i32
    scf.if %4 {
      %cst_14 = arith.constant 0.000000e+00 : f32
      %36 = vector.broadcast %cst_14 : f32 to vector<8x128xf32>
      %c0_15 = arith.constant 0 : index
      %c0_16 = arith.constant 0 : index
      %c0_17 = arith.constant 0 : index
      %37 = vector.load %arg5[%c0_15, %c0_16, %c0_17] : memref<1x8x128xf32, #tpu.memory_space<vmem>>, vector<1x8x128xf32>
      %38 = vector.shape_cast %37 : vector<1x8x128xf32> to vector<8x128xf32>
      %39 = vector.shape_cast %36 : vector<8x128xf32> to vector<1x8x128xf32>
      tpu.vector_store %arg5[%c0_15, %c0_16, %c0_17], %39 {strides = array<i32>} : memref<1x8x128xf32, #tpu.memory_space<vmem>>, vector<1x8x128xf32>,
    } else {
    }
    %c0 = arith.constant 0 : index
    %c0_2 = arith.constant 0 : index
    %c0_3 = arith.constant 0 : index
    %5 = vector.load %arg4[%c0, %c0_2, %c0_3] : memref<1x16x128xf32, #tpu.memory_space<vmem>>, vector<1x16x128xf32>
    %6 = vector.shape_cast %5 : vector<1x16x128xf32> to vector<16x128xf32>
    %cst = arith.constant dense<0.000000e+00> : vector<16xf32>
    %7 = vector.multi_reduction <add>, %6, %cst [1] : vector<16x128xf32> to vector<16xf32>
    %8 = vector.shape_cast %7 : vector<16xf32> to vector<16x1xf32>
    %cst_4 = arith.constant 1.280000e+02 : f32
    %9 = vector.broadcast %cst_4 : f32 to vector<16x1xf32>
    %10 = arith.divf %8, %9 : vector<16x1xf32>
    %11 = arith.mulf %6, %6 : vector<16x128xf32>
    %cst_5 = arith.constant dense<0.000000e+00> : vector<16xf32>
    %12 = vector.multi_reduction <add>, %11, %cst_5 [1] : vector<16x128xf32> to vector<16xf32>
    %13 = vector.shape_cast %12 : vector<16xf32> to vector<16x1xf32>
    %cst_6 = arith.constant 1.280000e+02 : f32
    %14 = vector.broadcast %cst_6 : f32 to vector<16x1xf32>
    %15 = arith.divf %13, %14 : vector<16x1xf32>
    %16 = arith.mulf %10, %10 : vector<16x1xf32>
    %17 = arith.subf %15, %16 : vector<16x1xf32>
    %cst_7 = arith.constant 0.000000e+00 : f32
    %18 = vector.broadcast %cst_7 : f32 to vector<16x1xf32>
    %19 = arith.maximumf %17, %18 : vector<16x1xf32>
    %20 = vector.broadcast %10 : vector<16x1xf32> to vector<16x128xf32>
    %21 = arith.subf %6, %20 : vector<16x128xf32>
    %cst_8 = arith.constant 9.99999974E-6 : f32
    %22 = vector.broadcast %cst_8 : f32 to vector<16x1xf32>
    %23 = arith.addf %19, %22 : vector<16x1xf32>
    %24 = math.rsqrt %23 : vector<16x1xf32>
    %25 = vector.broadcast %24 : vector<16x1xf32> to vector<16x128xf32>
    %26 = arith.mulf %21, %25 : vector<16x128xf32>
    %c0_i32_9 = arith.constant 0 : i32
    %27 = arith.cmpi eq, %arg2, %c0_i32_9 : i32
    %28 = arith.extui %27 : i1 to i32
    %c0_i32_10 = arith.constant 0 : i32
    %29 = arith.cmpi ne, %28, %c0_i32_10 : i32
    scf.if %29 {
      %c0_14 = arith.constant 0 : index
      %c0_15 = arith.constant 0 : index
      %36 = vector.load %arg6[%c0_14, %c0_15] : memref<16x128xf32, #tpu.memory_space<vmem>>, vector<16x128xf32>
      tpu.vector_store %arg6[%c0_14, %c0_15], %26 {strides = array<i32>} : memref<16x128xf32, #tpu.memory_space<vmem>>, vector<16x128xf32>,
    } else {
    }
    %c0_i32_11 = arith.constant 0 : i32
    %30 = arith.cmpi sgt, %arg2, %c0_i32_11 : i32
    %31 = arith.extui %30 : i1 to i32
    %c0_i32_12 = arith.constant 0 : i32
    %32 = arith.cmpi ne, %31, %c0_i32_12 : i32
    scf.if %32 {
      %c0_14 = arith.constant 0 : index
      %c0_15 = arith.constant 0 : index
      %36 = vector.load %arg6[%c0_14, %c0_15] : memref<16x128xf32, #tpu.memory_space<vmem>>, vector<16x128xf32>
      %37 = arith.addf %36, %26 : vector<16x128xf32>
      %c0_16 = arith.constant 0 : index
      %c0_17 = arith.constant 0 : index
      %38 = vector.load %arg6[%c0_16, %c0_17] : memref<16x128xf32, #tpu.memory_space<vmem>>, vector<16x128xf32>
      tpu.vector_store %arg6[%c0_16, %c0_17], %37 {strides = array<i32>} : memref<16x128xf32, #tpu.memory_space<vmem>>, vector<16x128xf32>,
    } else {
    }
    %c2_i32 = arith.constant 2 : i32
    %33 = arith.cmpi eq, %arg2, %c2_i32 : i32
    %34 = arith.extui %33 : i1 to i32
    %c0_i32_13 = arith.constant 0 : i32
    %35 = arith.cmpi ne, %34, %c0_i32_13 : i32
    scf.if %35 {
      %c0_14 = arith.constant 0 : index
      %c0_15 = arith.constant 0 : index
      %36 = vector.load %arg6[%c0_14, %c0_15] : memref<16x128xf32, #tpu.memory_space<vmem>>, vector<16x128xf32>
      %cst_16 = arith.constant 0.333333343 : f32
      %37 = vector.broadcast %cst_16 : f32 to vector<16x128xf32>
      %38 = arith.mulf %36, %37 : vector<16x128xf32>
      %cst_17 = arith.constant dense<0.000000e+00> : vector<16xf32>
      %39 = vector.multi_reduction <add>, %38, %cst_17 [1] : vector<16x128xf32> to vector<16xf32>
      %40 = vector.shape_cast %39 : vector<16xf32> to vector<16x1xf32>
      %cst_18 = arith.constant 1.280000e+02 : f32
      %41 = vector.broadcast %cst_18 : f32 to vector<16x1xf32>
      %42 = arith.divf %40, %41 : vector<16x1xf32>
      %43 = arith.mulf %38, %38 : vector<16x128xf32>
      %cst_19 = arith.constant dense<0.000000e+00> : vector<16xf32>
      %44 = vector.multi_reduction <add>, %43, %cst_19 [1] : vector<16x128xf32> to vector<16xf32>
      %45 = vector.shape_cast %44 : vector<16xf32> to vector<16x1xf32>
      %cst_20 = arith.constant 1.280000e+02 : f32
      %46 = vector.broadcast %cst_20 : f32 to vector<16x1xf32>
      %47 = arith.divf %45, %46 : vector<16x1xf32>
      %48 = arith.mulf %42, %42 : vector<16x1xf32>
      %49 = arith.subf %47, %48 : vector<16x1xf32>
      %cst_21 = arith.constant 0.000000e+00 : f32
      %50 = vector.broadcast %cst_21 : f32 to vector<16x1xf32>
      %51 = arith.maximumf %49, %50 : vector<16x1xf32>
      %52 = vector.broadcast %42 : vector<16x1xf32> to vector<16x128xf32>
      %53 = arith.subf %38, %52 : vector<16x128xf32>
      %cst_22 = arith.constant 9.99999974E-6 : f32
      %54 = vector.broadcast %cst_22 : f32 to vector<16x1xf32>
      %55 = arith.addf %51, %54 : vector<16x1xf32>
      %56 = math.rsqrt %55 : vector<16x1xf32>
      %57 = vector.broadcast %56 : vector<16x1xf32> to vector<16x128xf32>
      %58 = arith.mulf %53, %57 : vector<16x128xf32>
      %c0_23 = arith.constant 0 : index
      %c0_24 = arith.constant 0 : index
      %c0_25 = arith.constant 0 : index
      %59 = vector.load %arg3[%c0_23, %c0_24, %c0_25] : memref<1x16x128xf32, #tpu.memory_space<vmem>>, vector<1x16x128xf32>
      %60 = vector.shape_cast %59 : vector<1x16x128xf32> to vector<16x128xf32>
      %61 = arith.subf %60, %58 : vector<16x128xf32>
      %62 = math.absf %61 : vector<16x128xf32>
      %cst_26 = arith.constant 1.000000e+00 : f32
      %63 = vector.broadcast %cst_26 : f32 to vector<16x128xf32>
      %64 = arith.cmpf olt, %62, %63 : vector<16x128xf32>
      %cst_27 = arith.constant 5.000000e-01 : f32
      %65 = vector.broadcast %cst_27 : f32 to vector<16x128xf32>
      %66 = arith.mulf %65, %61 : vector<16x128xf32>
      %67 = arith.mulf %66, %61 : vector<16x128xf32>
      %cst_28 = arith.constant 5.000000e-01 : f32
      %68 = vector.broadcast %cst_28 : f32 to vector<16x128xf32>
      %69 = arith.subf %62, %68 : vector<16x128xf32>
      %70 = arith.select %64, %67, %69 : vector<16x128xi1>, vector<16x128xf32>
      %c1_i32 = arith.constant 1 : i32
      %71 = arith.muli %arg0, %c1_i32 : i32
      %72 = arith.addi %71, %arg1 : i32
      %c1_i32_29 = arith.constant 1 : i32
      %73 = arith.addi %72, %c1_i32_29 : i32
      %c16_i32 = arith.constant 16 : i32
      %74 = arith.muli %73, %c16_i32 : i32
      %c16_i32_30 = arith.constant 16 : i32
      %75 = arith.cmpi sle, %74, %c16_i32_30 : i32
      %76 = arith.extui %75 : i1 to i32
      %c0_i32_31 = arith.constant 0 : i32
      %77 = arith.cmpi ne, %76, %c0_i32_31 : i32
      scf.if %77 {
        %c0_33 = arith.constant 0 : index
        %c0_34 = arith.constant 0 : index
        %c0_35 = arith.constant 0 : index
        %81 = vector.load %arg5[%c0_33, %c0_34, %c0_35] : memref<1x8x128xf32, #tpu.memory_space<vmem>>, vector<1x8x128xf32>
        %82 = vector.shape_cast %81 : vector<1x8x128xf32> to vector<8x128xf32>
        %83 = vector.shape_cast %70 : vector<16x128xf32> to vector<2x8x128xf32>
        %cst_36 = arith.constant dense<0.000000e+00> : vector<8x128xf32>
        %84 = vector.multi_reduction <add>, %83, %cst_36 [0] : vector<2x8x128xf32> to vector<8x128xf32>
        %85 = arith.addf %82, %84 : vector<8x128xf32>
        %c0_37 = arith.constant 0 : index
        %c0_38 = arith.constant 0 : index
        %c0_39 = arith.constant 0 : index
        %86 = vector.load %arg5[%c0_37, %c0_38, %c0_39] : memref<1x8x128xf32, #tpu.memory_space<vmem>>, vector<1x8x128xf32>
        %87 = vector.shape_cast %86 : vector<1x8x128xf32> to vector<8x128xf32>
        %88 = vector.shape_cast %85 : vector<8x128xf32> to vector<1x8x128xf32>
        tpu.vector_store %arg5[%c0_37, %c0_38, %c0_39], %88 {strides = array<i32>} : memref<1x8x128xf32, #tpu.memory_space<vmem>>, vector<1x8x128xf32>,
      } else {
      }
      %true = arith.constant true
      %78 = arith.xori %75, %true : i1
      %79 = arith.extui %78 : i1 to i32
      %c0_i32_32 = arith.constant 0 : i32
      %80 = arith.cmpi ne, %79, %c0_i32_32 : i32
      scf.if %80 {
        %c16_i32_33 = arith.constant 16 : i32
        %81 = arith.muli %72, %c16_i32_33 : i32
        %82 = tpu.iota {dimensions = array<i32: 0>} : vector<16x1xi32>
        %83 = vector.broadcast %81 : i32 to vector<16x1xi32>
        %84 = arith.addi %83, %82 : vector<16x1xi32>
        %c16_i32_34 = arith.constant 16 : i32
        %85 = vector.broadcast %c16_i32_34 : i32 to vector<16x1xi32>
        %86 = arith.cmpi slt, %84, %85 : vector<16x1xi32>
        %cst_35 = arith.constant 0.000000e+00 : f32
        %87 = vector.shape_cast %86 : vector<16x1xi1> to vector<16x1xi1>
        %88 = vector.broadcast %87 : vector<16x1xi1> to vector<16x128xi1>
        %89 = vector.broadcast %cst_35 : f32 to vector<16x128xf32>
        %90 = arith.select %88, %70, %89 : vector<16x128xi1>, vector<16x128xf32>
        %c0_36 = arith.constant 0 : index
        %c0_37 = arith.constant 0 : index
        %c0_38 = arith.constant 0 : index
        %91 = vector.load %arg5[%c0_36, %c0_37, %c0_38] : memref<1x8x128xf32, #tpu.memory_space<vmem>>, vector<1x8x128xf32>
        %92 = vector.shape_cast %91 : vector<1x8x128xf32> to vector<8x128xf32>
        %93 = vector.shape_cast %90 : vector<16x128xf32> to vector<2x8x128xf32>
        %cst_39 = arith.constant dense<0.000000e+00> : vector<8x128xf32>
        %94 = vector.multi_reduction <add>, %93, %cst_39 [0] : vector<2x8x128xf32> to vector<8x128xf32>
        %95 = arith.addf %92, %94 : vector<8x128xf32>
        %c0_40 = arith.constant 0 : index
        %c0_41 = arith.constant 0 : index
        %c0_42 = arith.constant 0 : index
        %96 = vector.load %arg5[%c0_40, %c0_41, %c0_42] : memref<1x8x128xf32, #tpu.memory_space<vmem>>, vector<1x8x128xf32>
        %97 = vector.shape_cast %96 : vector<1x8x128xf32> to vector<8x128xf32>
        %98 = vector.shape_cast %95 : vector<8x128xf32> to vector<1x8x128xf32>
        tpu.vector_store %arg5[%c0_40, %c0_41, %c0_42], %98 {strides = array<i32>} : memref<1x8x128xf32, #tpu.memory_space<vmem>>, vector<1x8x128xf32>,
      } else {
      }
    } else {
    }
    return
  }
  func.func @transform_0(%arg0: i32, %arg1: i32, %arg2: i32) -> (i32, i32, i32) {
    %c1_i32 = arith.constant 1 : i32
    %0 = arith.muli %arg0, %c1_i32 : i32
    %1 = arith.addi %0, %arg1 : i32
    %c0_i32 = arith.constant 0 : i32
    %2 = arith.minsi %1, %c0_i32 : i32
    %c3_i32 = arith.constant 3 : i32
    %c0_i32_0 = arith.constant 0 : i32
    %c0_i32_1 = arith.constant 0 : i32
    return %c3_i32, %2, %c0_i32_0 : i32, i32, i32
  }
  func.func @transform_1(%arg0: i32, %arg1: i32, %arg2: i32) -> (i32, i32, i32) {
    %c1_i32 = arith.constant 1 : i32
    %0 = arith.addi %c1_i32, %arg2 : i32
    %c1_i32_0 = arith.constant 1 : i32
    %1 = arith.muli %arg0, %c1_i32_0 : i32
    %2 = arith.addi %1, %arg1 : i32
    %c0_i32 = arith.constant 0 : i32
    %3 = arith.minsi %2, %c0_i32 : i32
    %c0_i32_1 = arith.constant 0 : i32
    %c0_i32_2 = arith.constant 0 : i32
    return %0, %3, %c0_i32_1 : i32, i32, i32
  }
  func.func @transform_2(%arg0: i32, %arg1: i32, %arg2: i32) -> (i32, i32, i32) {
    %c0_i32 = arith.constant 0 : i32
    %c0_i32_0 = arith.constant 0 : i32
    %c0_i32_1 = arith.constant 0 : i32
    return %arg0, %c0_i32, %c0_i32_0 : i32, i32, i32
  }
}

</mosaic_0001>

<llo_original>
// kernel: tpu_custom_call.1
$region0: #{tpu_custom_call.1}
  #allocation0 [shape = 'u32[]', space=smem, size = 0x4, offset = 0x4, fixed_abs, tag = 'smem constant byte address 0x4 - core index']
  #allocation1 [shape = 'u32[144,128]{1,0:T(1,128)}', space=vmem, size = 0x12000, scoped, tag = 'internal scratch']
  #allocation2 [shape = 'f32[16,128]{1,0:T(8,128)}', space=vmem, size = 0x2000, scoped, tag = 'scratch operand']
  %s0 = inlined_call_operand.hbm [shape: f32[4,16,128], index: 0, kind: input, shape index: {}]
  %s1 = inlined_call_operand.hbm [shape: f32[4,16,128], index: 1, kind: input, shape index: {}]
  %s2 = inlined_call_operand.hbm [shape: f32[1,8,128], index: 2, kind: output, shape index: {}]
  %s3 = sld [smem:[#allocation0]]
  $region73: #{tpu_custom_call.1} parent=0
    _
  %s5 = ssub.s32 1, %s3
  %s6 = scalar_select 0, %s5, %s3
  $region1: #{tpu_custom_call.1} parent=0
    #allocation3 [shape = 'u8[8192]{0}', space=vmem, size = 0x2000, scoped, tag = 'input window, operand 0, single buffered']
    #allocation4 [shape = 's32[2]{0}', space=sflag, size = 0x8, scoped, tag = 'scoped memory for tpu_custom_call.1']
    #allocation5 [shape = 's32[2]{0}', space=sflag, size = 0x8, scoped, tag = 'scoped memory for tpu_custom_call.1']
    #allocation6 [shape = 'u8[16384]{0}', space=vmem, size = 0x4000, scoped, tag = 'input window, operand 1']
    #allocation7 [shape = 's32[2]{0}', space=sflag, size = 0x8, scoped, tag = 'scoped memory for tpu_custom_call.1']
    #allocation8 [shape = 'u8[4096]{0}', space=vmem, size = 0x1000, scoped, tag = 'output window, operand 0, single buffered']
    %7 = vsyncpa [#allocation4], 0
    %8 = vsyncpa [#allocation7], 0
    %s9 = scalar_lea.sflag [#allocation7], 1
    %10 = vsyncpa %s9, 0
    %11 = vsyncpa [#allocation5], 0
    loop: start=0, step=1, limit=5
    $region2: #{tpu_custom_call.1} parent=1 // loop_pre_header
      _
    $region3: #{tpu_custom_call.1} parent=1 // loop_header
      %s13 = sphi 0, %s17
      %p14 = scmp.ge.s32.totalorder %s13, 5
      %s20 = sphi 0, %s39
      %s21 = sphi 0, %s35
      %s22 = sphi 0, %s31
      %s23 = sphi 0, %s20
      %s24 = sphi 0, %s21
      %s25 = sphi 0, %s22
      %s26 = sphi 0, %s23
      %s27 = sphi 0, %s24
      %s28 = sphi 0, %s25
      %s48 = sphi 0, %s50
      %s51 = sphi 0, %s48
      %s52 = sphi 0, %s51
      %s68 = sphi 0, %s52
      %s84 = sphi 0, %s86
      %s87 = sphi 0, %s84
      %s88 = sphi 0, %s87
      %s104 = sphi 0, %s88
      %s110 = sphi 0, %s112
      %s113 = sphi 0, %s110
      %s114 = sphi 0, %s113
      %s130 = sphi 0, %s114
    $region4: #{tpu_custom_call.1} parent=1 // loop_header_branch
      %16 = sbr.rel (%p14) target = $region8
    $region5: #{tpu_custom_call.1} parent=1 // loop_body
      %s18 = ssub.s32 %s13, 1
      %s19 = ssub.s32 %s13, 2
      %s29 = sadd.s32 1, %s22
      %p30 = scmp.ge.s32.totalorder %s29, 3
      %s31 = scalar_select %p30, 0, %s29
      %s32 = sadd.s32 1, %s21
      %s33 = scalar_select %p30, %s32, %s21
      %p34 = scmp.ge.s32.totalorder %s33, 1
      %s35 = scalar_select %p34, 0, %s33
      %s36 = sadd.s32 1, %s20
      %s37 = scalar_select %p34, %s36, %s20
      %p38 = scmp.ge.s32.totalorder %s37, 1
      %s39 = scalar_select %p38, 0, %s37
      %s40 = sadd.s32 %s20, %s21
      %p41 = scmp.lt.s32.totalorder %s40, 0
      %s42 = scalar_select %p41, %s40, 0
      %s43 = sadd.s32 %s39, %s35
      %p44 = scmp.lt.s32.totalorder %s43, 0
      %s45 = scalar_select %p44, %s43, 0
      %s46 = ssub.s32 %s42, %s45
      %p47 = scmp.eq.s32.totalorder %s46, 0
      %s49 = sadd.s32 %s48, 1
      %s50 = scalar_select %p47, %s48, %s49
      %p53 = pneg %p47
      %p54 = scmp.eq.s32.totalorder %s13, 2
      %p55 = por %p53, %p54
      %p56 = scmp.ne.s32.totalorder %s48, %s51
      %p57 = scmp.eq.s32.totalorder %s13, 0
      %p58 = por %p56, %p57
      %p59 = scmp.ne.s32.totalorder %s48, %s51
      %p60 = scmp.eq.s32.totalorder %s18, 2
      %p61 = por %p59, %p60
      %p62 = scmp.ne.s32.totalorder %s51, %s52
      %p63 = scmp.eq.s32.totalorder %s18, 0
      %p64 = por %p62, %p63
      %p65 = scmp.ne.s32.totalorder %s51, %s52
      %p66 = scmp.eq.s32.totalorder %s19, 2
      %p67 = por %p65, %p66
      %p69 = scmp.ne.s32.totalorder %s52, %s68
      %p70 = scmp.eq.s32.totalorder %s19, 0
      %p71 = por %p69, %p70
      %s72 = sadd.s32 %s22, 1
      %s73 = sadd.s32 %s20, %s21
      %p74 = scmp.lt.s32.totalorder %s73, 0
      %s75 = scalar_select %p74, %s73, 0
      %s76 = sadd.s32 %s31, 1
      %s77 = sadd.s32 %s39, %s35
      %p78 = scmp.lt.s32.totalorder %s77, 0
      %s79 = scalar_select %p78, %s77, 0
      %s80 = ssub.s32 %s72, %s76
      %s81 = ssub.s32 %s75, %s79
      %s82 = sor.u32 %s80, %s81
      %p83 = scmp.eq.s32.totalorder %s82, 0
      %s85 = sadd.s32 %s84, 1
      %s86 = scalar_select %p83, %s84, %s85
      %p89 = pneg %p83
      %p90 = scmp.eq.s32.totalorder %s13, 2
      %p91 = por %p89, %p90
      %p92 = scmp.ne.s32.totalorder %s84, %s87
      %p93 = scmp.eq.s32.totalorder %s13, 0
      %p94 = por %p92, %p93
      %p95 = scmp.ne.s32.totalorder %s84, %s87
      %p96 = scmp.eq.s32.totalorder %s18, 2
      %p97 = por %p95, %p96
      %p98 = scmp.ne.s32.totalorder %s87, %s88
      %p99 = scmp.eq.s32.totalorder %s18, 0
      %p100 = por %p98, %p99
      %p101 = scmp.ne.s32.totalorder %s87, %s88
      %p102 = scmp.eq.s32.totalorder %s19, 2
      %p103 = por %p101, %p102
      %p105 = scmp.ne.s32.totalorder %s88, %s104
      %p106 = scmp.eq.s32.totalorder %s19, 0
      %p107 = por %p105, %p106
      %s108 = ssub.s32 %s20, %s39
      %p109 = scmp.eq.s32.totalorder %s108, 0
      %s111 = sadd.s32 %s110, 1
      %s112 = scalar_select %p109, %s110, %s111
      %p115 = pneg %p109
      %p116 = scmp.eq.s32.totalorder %s13, 2
      %p117 = por %p115, %p116
      %p118 = scmp.ne.s32.totalorder %s110, %s113
      %p119 = scmp.eq.s32.totalorder %s13, 0
      %p120 = por %p118, %p119
      %p121 = scmp.ne.s32.totalorder %s110, %s113
      %p122 = scmp.eq.s32.totalorder %s18, 2
      %p123 = por %p121, %p122
      %p124 = scmp.ne.s32.totalorder %s113, %s114
      %p125 = scmp.eq.s32.totalorder %s18, 0
      %p126 = por %p124, %p125
      %p127 = scmp.ne.s32.totalorder %s113, %s114
      %p128 = scmp.eq.s32.totalorder %s19, 2
      %p129 = por %p127, %p128
      %p131 = scmp.ne.s32.totalorder %s114, %s130
      %p132 = scmp.eq.s32.totalorder %s19, 0
      %p133 = por %p131, %p132
      %p134 = scmp.le.s32.totalorder 1, %s13
      %p135 = scmp.lt.s32.totalorder %s13, 4
      %p136 = pnand %p134, %p135
      %p137 = pneg %p136
      // Predicated region
      $region9: #{tpu_custom_call.1} parent=5 // pred_check
        _
      $region10: #{tpu_custom_call.1} parent=5 // pred_check_branch
        %139 = sbr.rel (%p136) target = $region12
      $region11: #{tpu_custom_call.1} parent=5 // pred_region
        %s140 = ssub.s32 %s13, 1
        // Predicated region
        $region13: #{tpu_custom_call.1} parent=11 // pred_check
          %p141 = pneg %p64
        $region14: #{tpu_custom_call.1} parent=11 // pred_check_branch
          %143 = sbr.rel (%p141) target = $region16
        $region15: #{tpu_custom_call.1} parent=11 // pred_region
          %s144 = sadd.s32 %s23, %s24
          %p145 = scmp.lt.s32.totalorder %s144, 0
          %s146 = scalar_select %p145, %s144, 0
          %s147 = smul.u32 2, %s146
          %s149 = ssub.s32 256, 256
          %150 = vsyncadd [#allocation4], %s149
          %s151 = sadd.s32 %s147, 6
          %s152 = smul.addr %s151, 128
          %s153 = scalar_lea.hbm %s0, %s152
          %s154 = sshll.u32 [#allocation3], 4
          %s155 = int_to_ptr.vmem [resolvable:$true] %s154
          %160 = dma.hbm_to_vmem [thread:$0]  %s153, 256, %s155, [#allocation4], 128, 128, 8
        $region16: #{tpu_custom_call.1} parent=11 // pred_fallthru
          _
      $region12: #{tpu_custom_call.1} parent=5 // pred_fallthru
        _
      %p161 = scmp.lt.s32.totalorder %s13, 3
      // Predicated region
      $region17: #{tpu_custom_call.1} parent=5 // pred_check
        %p162 = pneg %p161
      $region18: #{tpu_custom_call.1} parent=5 // pred_check_branch
        %164 = sbr.rel (%p162) target = $region20
      $region19: #{tpu_custom_call.1} parent=5 // pred_region
        // Predicated region
        $region21: #{tpu_custom_call.1} parent=19 // pred_check
          %p165 = pneg %p94
        $region22: #{tpu_custom_call.1} parent=19 // pred_check_branch
          %167 = sbr.rel (%p165) target = $region24
        $region23: #{tpu_custom_call.1} parent=19 // pred_region
          %s168 = sand.u32 %s84, 1
          %s169 = scalar_lea.sflag [#allocation7], %s168
          %s170 = sand.u32 %s84, 1
          %s171 = smul.addr %s170, 16
          %s172 = scalar_lea.vmem [#allocation6], %s171
          %s173 = sadd.s32 %s22, 1
          %s174 = sadd.s32 %s20, %s21
          %p175 = scmp.lt.s32.totalorder %s174, 0
          %s176 = scalar_select %p175, %s174, 0
          %s177 = smul.u32 2, %s176
          %s179 = ssub.s32 256, 256
          %180 = vsyncadd %s169, %s179
          %s181 = smul.addr %s173, 2
          %s182 = sadd.s32 %s177, %s181
          %s183 = smul.addr %s182, 128
          %s184 = scalar_lea.hbm %s1, %s183
          %s185 = sshll.u32 %s172, 4
          %s186 = int_to_ptr.vmem [resolvable:$true] %s185
          %191 = dma.hbm_to_vmem [thread:$0]  %s184, 256, %s186, %s169, 128, 128, 8
        $region24: #{tpu_custom_call.1} parent=19 // pred_fallthru
          _
      $region20: #{tpu_custom_call.1} parent=5 // pred_fallthru
        _
      %p192 = scmp.le.s32.totalorder 1, %s13
      %p193 = scmp.lt.s32.totalorder %s13, 4
      %p194 = pnand %p192, %p193
      %p195 = pneg %p194
      // Predicated region
      $region25: #{tpu_custom_call.1} parent=5 // pred_check
        _
      $region26: #{tpu_custom_call.1} parent=5 // pred_check_branch
        %197 = sbr.rel (%p194) target = $region28
      $region27: #{tpu_custom_call.1} parent=5 // pred_region
        %s198 = ssub.s32 %s13, 1
        // Predicated region
        $region29: #{tpu_custom_call.1} parent=27 // pred_check
          %p199 = pneg %p64
        $region30: #{tpu_custom_call.1} parent=27 // pred_check_branch
          %201 = sbr.rel (%p199) target = $region32
        $region31: #{tpu_custom_call.1} parent=27 // pred_region
          %202 = dma.done [#allocation4], 256
        $region32: #{tpu_custom_call.1} parent=27 // pred_fallthru
          _
        %s203 = sand.u32 %s87, 1
        %s204 = scalar_lea.sflag [#allocation7], %s203
        %s205 = sand.u32 %s87, 1
        %s206 = smul.addr %s205, 16
        %s207 = scalar_lea.vmem [#allocation6], %s206
        // Predicated region
        $region33: #{tpu_custom_call.1} parent=27 // pred_check
          %p208 = pneg %p100
        $region34: #{tpu_custom_call.1} parent=27 // pred_check_branch
          %210 = sbr.rel (%p208) target = $region36
        $region35: #{tpu_custom_call.1} parent=27 // pred_region
          %211 = dma.done %s204, 256
        $region36: #{tpu_custom_call.1} parent=27 // pred_fallthru
          _
        %p212 = pneg %p64
        %p213 = pneg %p61
        %s214 = sand.u32 %s87, 1
        %s215 = scalar_lea.sflag [#allocation7], %s214
        %s216 = sand.u32 %s87, 1
        %s217 = smul.addr %s216, 16
        %s218 = scalar_lea.vmem [#allocation6], %s217
        %p219 = pneg %p100
        %p220 = pneg %p97
        %p221 = pneg %p126
        %p222 = pneg %p123
        %s223 = sadd.s32 %s23, %s24
        %p224 = scmp.lt.s32.totalorder %s223, 0
        %s225 = scalar_select %p224, %s223, 0
        %s226 = smul.u32 2, %s225
        %s227 = sadd.s32 %s25, 1
        %s228 = sadd.s32 %s23, %s24
        %p229 = scmp.lt.s32.totalorder %s228, 0
        %s230 = scalar_select %p229, %s228, 0
        %s231 = smul.u32 2, %s230
        %p232 = scmp.eq.s32.totalorder %s24, 0
        %p233 = scmp.eq.s32.totalorder %s25, 0
        %p234 = pnand %p232, %p233
        %p235 = pneg %p234
        // Predicated region
        $region37: #{tpu_custom_call.1} parent=27 // pred_check
          _
        $region38: #{tpu_custom_call.1} parent=27 // pred_check_branch
          %237 = sbr.rel (%p234) target = $region40
        $region39: #{tpu_custom_call.1} parent=27 // pred_region
          %238 = vst [vmem:[#allocation8] sm:$0xff] 0.0
        $region40: #{tpu_custom_call.1} parent=27 // pred_fallthru
          _
        %v239 = vld [vmem:[%s207] sm:$0xff]
        %v240 = vld [vmem:[%s207 + $0x8] sm:$0xff]
        %241 = vadd.xlane.f32.xlu0 %v239
        %v242 = vpop.xlane.xlu0 %241
        %243 = vadd.xlane.f32.xlu0 %v240
        %v244 = vpop.xlane.xlu0 %243
        %v245 = vrcp.pop 128.0
        %v246 = vmul.f32 %v242, %v245
        %v247 = vmul.f32 %v244, %v245
        %v248 = vmul.f32 %v239, %v239
        %v249 = vmul.f32 %v240, %v240
        %250 = vadd.xlane.f32.xlu0 %v248
        %v251 = vpop.xlane.xlu0 %250
        %252 = vadd.xlane.f32.xlu0 %v249
        %v253 = vpop.xlane.xlu0 %252
        %v254 = vmul.f32 %v251, %v245
        %v255 = vmul.f32 %v253, %v245
        %v256 = vmul.f32 %v246, %v246
        %v257 = vmul.f32 %v247, %v247
        %v258 = vsub.f32 %v254, %v256
        %v259 = vsub.f32 %v255, %v257
        %v260 = vmax.f32 %v258, 0.0
        %v261 = vmax.f32 %v259, 0.0
        %v262 = vsub.f32 %v239, %v246
        %v263 = vsub.f32 %v240, %v247
        %v264 = vadd.f32 %v260, 1e-05
        %v265 = vadd.f32 %v261, 1e-05
        %v266 = vrsqrt.pop %v264
        %v267 = vrsqrt.pop %v265
        %v268 = vmul.f32 %v262, %v266
        %v269 = vmul.f32 %v263, %v267
        // Predicated region
        $region41: #{tpu_custom_call.1} parent=27 // pred_check
          %p270 = pneg %p233
        $region42: #{tpu_custom_call.1} parent=27 // pred_check_branch
          %272 = sbr.rel (%p270) target = $region44
        $region43: #{tpu_custom_call.1} parent=27 // pred_region
          %273 = vst [vmem:[#allocation2] sm:$0xff] %v268
          %274 = vst [vmem:[#allocation2 + $0x8] sm:$0xff] %v269
        $region44: #{tpu_custom_call.1} parent=27 // pred_fallthru
          _
        %p275 = scmp.gt.s32.totalorder %s25, 0
        // Predicated region
        $region45: #{tpu_custom_call.1} parent=27 // pred_check
          %p276 = pneg %p275
        $region46: #{tpu_custom_call.1} parent=27 // pred_check_branch
          %278 = sbr.rel (%p276) target = $region48
        $region47: #{tpu_custom_call.1} parent=27 // pred_region
          %v279 = vld [vmem:[#allocation2] sm:$0xff]
          %v280 = vld [vmem:[#allocation2 + $0x8] sm:$0xff]
          %v281 = vadd.f32 %v279, %v268
          %v282 = vadd.f32 %v280, %v269
          %283 = vst [vmem:[#allocation2] sm:$0xff] %v281
          %284 = vst [vmem:[#allocation2 + $0x8] sm:$0xff] %v282
        $region48: #{tpu_custom_call.1} parent=27 // pred_fallthru
          _
        %p285 = scmp.eq.s32.totalorder %s25, 2
        // Predicated region
        $region49: #{tpu_custom_call.1} parent=27 // pred_check
          %p286 = pneg %p285
        $region50: #{tpu_custom_call.1} parent=27 // pred_check_branch
          %288 = sbr.rel (%p286) target = $region52
        $region51: #{tpu_custom_call.1} parent=27 // pred_region
          %v289 = vld [vmem:[#allocation2] sm:$0xff]
          %v290 = vld [vmem:[#allocation2 + $0x8] sm:$0xff]
          %v291 = vmul.f32 %v289, 0.33333334
          %v292 = vmul.f32 %v290, 0.33333334
          %293 = vadd.xlane.f32.xlu0 %v291
          %v294 = vpop.xlane.xlu0 %293
          %295 = vadd.xlane.f32.xlu0 %v292
          %v296 = vpop.xlane.xlu0 %295
          %v297 = vmul.f32 %v294, %v245
          %v298 = vmul.f32 %v296, %v245
          %v299 = vmul.f32 %v291, %v291
          %v300 = vmul.f32 %v292, %v292
          %301 = vadd.xlane.f32.xlu0 %v299
          %v302 = vpop.xlane.xlu0 %301
          %303 = vadd.xlane.f32.xlu0 %v300
          %v304 = vpop.xlane.xlu0 %303
          %v305 = vmul.f32 %v302, %v245
          %v306 = vmul.f32 %v304, %v245
          %v307 = vmul.f32 %v297, %v297
          %v308 = vmul.f32 %v298, %v298
          %v309 = vsub.f32 %v305, %v307
          %v310 = vsub.f32 %v306, %v308
          %v311 = vmax.f32 %v309, 0.0
          %v312 = vmax.f32 %v310, 0.0
          %v313 = vsub.f32 %v291, %v297
          %v314 = vsub.f32 %v292, %v298
          %v315 = vadd.f32 %v311, 1e-05
          %v316 = vadd.f32 %v312, 1e-05
          %v317 = vrsqrt.pop %v315
          %v318 = vrsqrt.pop %v316
          %v319 = vmul.f32 %v313, %v317
          %v320 = vmul.f32 %v314, %v318
          %v321 = vld [vmem:[#allocation3] sm:$0xff]
          %v322 = vld [vmem:[#allocation3 + $0x8] sm:$0xff]
          %v323 = vsub.f32 %v321, %v319
          %v324 = vsub.f32 %v322, %v320
          %v325 = vand.u32 2147483647, %v323
          %v326 = vand.u32 2147483647, %v324
          %vm327 = vcmp.lt.f32.partialorder %v325, 1.0
          %vm328 = vcmp.lt.f32.partialorder %v326, 1.0
          %v329 = vmul.f32 %v323, 0.5
          %v330 = vmul.f32 %v324, 0.5
          %v331 = vmul.f32 %v329, %v323
          %v332 = vmul.f32 %v330, %v324
          %v333 = vsub.f32 %v325, 0.5
          %v334 = vsub.f32 %v326, 0.5
          %v335 = vsel %vm327, %v331, %v333
          %v336 = vsel %vm328, %v332, %v334
          %s337 = sadd.s32 %s23, %s24
          %s338 = sadd.s32 %s337, 1
          %s339 = smul.u32 %s338, 16
          %p340 = scmp.le.s32.totalorder %s339, 16
          // Predicated region
          $region53: #{tpu_custom_call.1} parent=51 // pred_check
            %p341 = pneg %p340
          $region54: #{tpu_custom_call.1} parent=51 // pred_check_branch
            %343 = sbr.rel (%p341) target = $region56
          $region55: #{tpu_custom_call.1} parent=51 // pred_region
            %v344 = vld [vmem:[#allocation8] sm:$0xff]
            %v345 = vadd.f32 %v335, %v336
            %v346 = vadd.f32 %v344, %v345
            %347 = vst [vmem:[#allocation8] sm:$0xff] %v346
          $region56: #{tpu_custom_call.1} parent=51 // pred_fallthru
            _
          %p348 = scmp.gt.s32.totalorder %s339, 16
          // Predicated region
          $region57: #{tpu_custom_call.1} parent=51 // pred_check
            %p349 = pneg %p348
          $region58: #{tpu_custom_call.1} parent=51 // pred_check_branch
            %351 = sbr.rel (%p349) target = $region60
          $region59: #{tpu_custom_call.1} parent=51 // pred_region
            %s352 = smul.u32 %s337, 16
            %v353 = vlaneseq
            %v354 = vshrl.u32 %v353, 7
            %v355 = vadd.s32 %v354, 8
            %v356 = vstv %s352
            %v357 = vadd.s32 %v356, %v354
            %v358 = vadd.s32 %v356, %v355
            %vm359 = vcmp.lt.s32.totalorder %v357, 16
            %vm360 = vcmp.lt.s32.totalorder %v358, 16
            %v361 = vsel %vm359, 1, 0
            %v362 = vsel %vm360, 1, 0
            %vm363 = vcmp.eq.s32.totalorder %v361, 1
            %vm364 = vcmp.eq.s32.totalorder %v362, 1
            %v365 = vsel %vm363, %v335, 0.0
            %v366 = vsel %vm364, %v336, 0.0
            %v367 = vld [vmem:[#allocation8] sm:$0xff]
            %v368 = vadd.f32 %v365, %v366
            %v369 = vadd.f32 %v367, %v368
            %370 = vst [vmem:[#allocation8] sm:$0xff] %v369
          $region60: #{tpu_custom_call.1} parent=51 // pred_fallthru
            _
        $region52: #{tpu_custom_call.1} parent=27 // pred_fallthru
          _
        // Predicated region
        $region61: #{tpu_custom_call.1} parent=27 // pred_check
          %p371 = pneg %p123
        $region62: #{tpu_custom_call.1} parent=27 // pred_check_branch
          %373 = sbr.rel (%p371) target = $region64
        $region63: #{tpu_custom_call.1} parent=27 // pred_region
          %s375 = ssub.s32 128, 128
          %376 = vsyncadd [#allocation5], %s375
          %s377 = smul.addr %s23, 128
          %s378 = scalar_lea.hbm %s2, %s377
          %s380 = sshll.u32 [#allocation8], 4
          %s381 = int_to_ptr.vmem [resolvable:$true] %s380
          %383 = dma.vmem_to_hbm [thread:$0]  %s381, 128, %s378, [#allocation5]
        $region64: #{tpu_custom_call.1} parent=27 // pred_fallthru
          _
        // Predicated region
        $region65: #{tpu_custom_call.1} parent=27 // pred_check
          %p384 = pneg %p123
        $region66: #{tpu_custom_call.1} parent=27 // pred_check_branch
          %386 = sbr.rel (%p384) target = $region68
        $region67: #{tpu_custom_call.1} parent=27 // pred_region
          %387 = dma.done [#allocation5], 128
        $region68: #{tpu_custom_call.1} parent=27 // pred_fallthru
          _
      $region28: #{tpu_custom_call.1} parent=5 // pred_fallthru
        _
      %p388 = scmp.le.s32.totalorder 2, %s13
      // Predicated region
      $region69: #{tpu_custom_call.1} parent=5 // pred_check
        %p389 = pneg %p388
      $region70: #{tpu_custom_call.1} parent=5 // pred_check_branch
        %391 = sbr.rel (%p389) target = $region72
      $region71: #{tpu_custom_call.1} parent=5 // pred_region
        %s392 = ssub.s32 %s13, 2
      $region72: #{tpu_custom_call.1} parent=5 // pred_fallthru
        _
    $region6: #{tpu_custom_call.1} parent=1 // loop_footer
      %s17 = sadd.s32 1, %s13
    $region7: #{tpu_custom_call.1} parent=1 // loop_footer_branch
      %12 = sbr.rel target = $region3
    $region8: #{tpu_custom_call.1} parent=1 // loop_exit
      _
    %393 = vsyncpa [#allocation4], 1
    %s394 = scalar_lea.sflag [#allocation4], 1
    %395 = vsyncpa %s394, 1
    %396 = vsyncpa [#allocation7], 1
    %s397 = scalar_lea.sflag [#allocation7], 1
    %398 = vsyncpa %s397, 1
    %399 = vsyncpa [#allocation5], 1
    %s400 = scalar_lea.sflag [#allocation5], 1
    %401 = vsyncpa %s400, 1

</llo_original>
